<compile_context>
chip_gen: v7x
topology: tpu7x:2x2x1
jax: 0.10.0
libtpu: 0.0.40
codegen_flags: <defaults>
</compile_context>

<pallas_src>
import functools
import math

import jax
import jax.numpy as jnp
import numpy as np
from jax.experimental import pallas as pl
from jax.experimental.pallas import tpu as pltpu


def _attention_kernel(q_ref, k_ref, v_ref,
                      wq_ref, wk_ref, wv_ref, wp_ref, bp_ref,
                      o_ref, acc_ref,
                      *, num_heads: int):
    """One grid step == (one batch block) x (one head).

    Refs (VMEM):
      q_ref        : (bb, N, C)  compute dtype
      k_ref, v_ref : (bb, M, C)  compute dtype
      wq/wk/wv_ref : (1, C, D)   per-head input-projection slices (scale folded into Wq)
      wp_ref       : (1, D, C)   per-head output-projection slice
      bp_ref       : (1, C)      f32 projection bias
      o_ref        : (bb, N, C)  output (written once, at the last head)
      acc_ref      : (bb, N, C)  f32 output-projection accumulator (scratch)
    """
    h = pl.program_id(1)

    @pl.when(h == 0)
    def _init():
        acc_ref[...] = jnp.zeros_like(acc_ref)

    bb, n, c = q_ref.shape
    _, m, _ = k_ref.shape
    d = wq_ref.shape[-1]
    cdt = q_ref.dtype  # MXU operand dtype (bf16 by default)

    # Flatten batch rows for the 2-D projection matmuls (leading-dim merge;
    # a layout no-op when N/M are multiples of 8).
    q2 = q_ref[...].reshape(bb * n, c)
    k2 = k_ref[...].reshape(bb * m, c)
    v2 = v_ref[...].reshape(bb * m, c)

    # Per-head input projections (C-contraction on the MXU), f32 accumulation,
    # cast back to the compute dtype immediately to keep intermediates small.
    qh = jnp.dot(q2, wq_ref[0], preferred_element_type=jnp.float32)
    kh = jnp.dot(k2, wk_ref[0], preferred_element_type=jnp.float32)
    vh = jnp.dot(v2, wv_ref[0], preferred_element_type=jnp.float32)
    qh = qh.astype(cdt).reshape(bb, n, d)
    kh = kh.astype(cdt).reshape(bb, m, d)
    vh = vh.astype(cdt).reshape(bb, m, d)

    # Scores and context as leading-batch-dim contractions: no transposes.
    # TODO(synk): at small head_dim (D=4 here) these are tiny MXU contractions;
    # for large N/M, tile M with an online-softmax accumulator instead.
    s = jnp.einsum('bnd,bmd->bnm', qh, kh,
                   preferred_element_type=jnp.float32)          # (bb, N, M)
    s = s - jnp.max(s, axis=-1, keepdims=True)
    p = jnp.exp(s)
    p = p / jnp.sum(p, axis=-1, keepdims=True)                  # exact softmax

    ctx = jnp.einsum('bnm,bmd->bnd', p.astype(cdt), vh,
                     preferred_element_type=jnp.float32)        # (bb, N, D)

    # This head's slice of the output projection, accumulated over heads.
    contrib = jnp.dot(ctx.reshape(bb * n, d).astype(cdt), wp_ref[0],
                      preferred_element_type=jnp.float32)
    acc_ref[...] += contrib.reshape(bb, n, c)

    @pl.when(h == num_heads - 1)
    def _finalize():
        # TODO(synk): for C < 128 this store is lane-masked; a lane-dense
        # (rows*C/128, 128) output slab would need an in-kernel relayout.
        o_ref[...] = (acc_ref[...] + bp_ref[...]).astype(o_ref.dtype)


def _vmem_bytes_estimate(bb, n, m, c, d, act_itemsize):
    """Rough per-step VMEM working set, for budget/limit sizing."""
    io_blocks = 2 * ((bb * n * c + 2 * bb * m * c) * act_itemsize   # q, k, v (dbl-buf)
                     + bb * n * c * 4)                               # out block
    weights = 2 * (3 * c * d + d * c) * act_itemsize + 8 * c         # per-head slices + bias
    scratch = bb * n * c * 4                                         # f32 accumulator
    interm = (bb * (n + 2 * m) * d + 2 * bb * n * m
              + bb * n * d + bb * n * c) * 4                         # f32 temporaries
    return io_blocks + weights + scratch + interm


def attention_pallas(q, k, v, params, *, num_heads: int,
                     compute_dtype=jnp.bfloat16, batch_block=None,
                     vmem_limit_bytes=None):
    """q: (B, N, C), k/v: (B, M, C).  Returns (B, N, C) in q.dtype."""
    B, N, C = q.shape
    Bk, M, Ck = k.shape
    assert k.shape == v.shape and Bk == B and Ck == C
    assert C % num_heads == 0, "dim must be divisible by num_heads"
    D = C // num_heads
    scale = D ** (-0.5)

    # --- one-time parameter prep (outside the kernel) -----------------------
    f32 = jnp.float32
    wq_t = params["wq"].astype(f32).T * scale        # (C, C); softmax scale folded
    wk_t = params["wk"].astype(f32).T
    wv_t = params["wv"].astype(f32).T
    wp_t = params["wp"].astype(f32).T
    # Per-head slices with head as the leading (grid-mapped) axis.
    # TODO(synk): on v7x these static weights could be pre-quantized to fp8.
    wq_h = wq_t.reshape(C, num_heads, D).transpose(1, 0, 2).astype(compute_dtype)  # (H, C, D)
    wk_h = wk_t.reshape(C, num_heads, D).transpose(1, 0, 2).astype(compute_dtype)
    wv_h = wv_t.reshape(C, num_heads, D).transpose(1, 0, 2).astype(compute_dtype)
    wp_h = wp_t.reshape(num_heads, D, C).astype(compute_dtype)                      # (H, D, C)
    bp = params["bp"].astype(f32).reshape(1, C)

    qc = q.astype(compute_dtype)
    kc = k.astype(compute_dtype)
    vc = v.astype(compute_dtype)
    itemsize = jnp.dtype(compute_dtype).itemsize

    # --- batch_block: >=2 batch grid steps when possible (v7x megacore),
    #     largest block fitting a conservative VMEM budget (keeps pipelining).
    if batch_block is None:
        divisors = [x for x in range(1, B + 1) if B % x == 0]
        prefer = [x for x in divisors if B // x >= 2] or divisors
        budget = 24 * 1024 * 1024
        fitting = [x for x in prefer
                   if _vmem_bytes_estimate(x, N, M, C, D, itemsize) <= budget]
        batch_block = max(fitting) if fitting else min(prefer)
    assert B % batch_block == 0, "batch must be divisible by batch_block"
    batch_steps = B // batch_block
    bb = batch_block

    if vmem_limit_bytes is None:
        need = _vmem_bytes_estimate(bb, N, M, C, D, itemsize)
        vmem_limit_bytes = min(64 * 1024 * 1024,
                               max(32 * 1024 * 1024, int(1.5 * need) + (1 << 20)))

    kernel = functools.partial(_attention_kernel, num_heads=num_heads)

    grid_spec = pltpu.PrefetchScalarGridSpec(
        num_scalar_prefetch=0,
        grid=(batch_steps, num_heads),
        in_specs=[
            pl.BlockSpec((bb, N, C), lambda b, h: (b, 0, 0)),   # q (resident over h)
            pl.BlockSpec((bb, M, C), lambda b, h: (b, 0, 0)),   # k
            pl.BlockSpec((bb, M, C), lambda b, h: (b, 0, 0)),   # v
            pl.BlockSpec((1, C, D), lambda b, h: (h, 0, 0)),    # Wq slice (scaled)
            pl.BlockSpec((1, C, D), lambda b, h: (h, 0, 0)),    # Wk slice
            pl.BlockSpec((1, C, D), lambda b, h: (h, 0, 0)),    # Wv slice
            pl.BlockSpec((1, D, C), lambda b, h: (h, 0, 0)),    # Wp slice
            pl.BlockSpec((1, C),    lambda b, h: (0, 0)),       # proj bias
        ],
        out_specs=pl.BlockSpec((bb, N, C), lambda b, h: (b, 0, 0)),
        scratch_shapes=[pltpu.VMEM((bb, N, C), jnp.float32)],
    )

    out = pl.pallas_call(
        kernel,
        out_shape=jax.ShapeDtypeStruct((B, N, C), q.dtype),
        grid_spec=grid_spec,
        compiler_params=pltpu.CompilerParams(
            dimension_semantics=("parallel", "arbitrary"),
            vmem_limit_bytes=vmem_limit_bytes),
    )(qc, kc, vc, wq_h, wk_h, wv_h, wp_h, bp)
    return out


def attention_ref(q, k, v, params, *, num_heads: int):
    """Pure-JAX f32 reference mirroring the PyTorch forward."""
    B, N, C = q.shape
    _, M, _ = k.shape
    D = C // num_heads
    scale = D ** (-0.5)
    qp = (q @ params["wq"].T).reshape(B, N, num_heads, D)
    kp = (k @ params["wk"].T).reshape(B, M, num_heads, D)
    vp = (v @ params["wv"].T).reshape(B, M, num_heads, D)
    attn = jnp.einsum("bnkc,bmkc->bknm", qp, kp) * scale
    attn = jax.nn.softmax(attn, axis=-1)
    x = jnp.einsum("bknm,bmkc->bnkc", attn, vp).reshape(B, N, C)
    return x @ params["wp"].T + params["bp"]


if __name__ == "__main__":
    # Small shapes consistent with the module: dim=32, num_heads=8, head_dim=4.
    B, N, M, C, H = 2, 8, 8, 32, 8

    key = jax.random.PRNGKey(0)
    kq, kk, kv, kwq, kwk, kwv, kwp, kbp = jax.random.split(key, 8)

    q = jax.random.normal(kq, (B, N, C), dtype=jnp.float32)
    k = jax.random.normal(kk, (B, M, C), dtype=jnp.float32)
    v = jax.random.normal(kv, (B, M, C), dtype=jnp.float32)

    # Deterministic parameter init (PyTorch Linear weight layout: (out, in)).
    bound = 1.0 / math.sqrt(C)
    params = {
        "wq": jax.random.uniform(kwq, (C, C), jnp.float32, -bound, bound),
        "wk": jax.random.uniform(kwk, (C, C), jnp.float32, -bound, bound),
        "wv": jax.random.uniform(kwv, (C, C), jnp.float32, -bound, bound),
        "wp": jax.random.uniform(kwp, (C, C), jnp.float32, -bound, bound),
        "bp": jax.random.uniform(kbp, (C,), jnp.float32, -bound, bound),
    }

    ref = attention_ref(q, k, v, params, num_heads=H)

    # Production path: bf16 MXU operands, f32 accumulation.
    out_bf16 = attention_pallas(q, k, v, params, num_heads=H)
    out_bf16 = jax.block_until_ready(out_bf16)
    np.testing.assert_allclose(np.asarray(out_bf16), np.asarray(ref),
                               rtol=3e-2, atol=3e-2)

    # f32 path (structural check, exact softmax normalization).
    out_f32 = attention_pallas(q, k, v, params, num_heads=H,
                               compute_dtype=jnp.float32)
    out_f32 = jax.block_until_ready(out_f32)
    np.testing.assert_allclose(np.asarray(out_f32), np.asarray(ref),
                               rtol=1e-2, atol=1e-2)

    print("KERNEL_OK")
</pallas_src>

<mosaic_0001>
module attributes {stable_mosaic.version = 11 : i64} {
  func.func @_attention_kernel(%arg0: i32, %arg1: i32, %arg2: memref<1x8x32xbf16, #tpu.memory_space<vmem>>, %arg3: memref<1x8x32xbf16, #tpu.memory_space<vmem>>, %arg4: memref<1x8x32xbf16, #tpu.memory_space<vmem>>, %arg5: memref<1x32x4xbf16, #tpu.memory_space<vmem>>, %arg6: memref<1x32x4xbf16, #tpu.memory_space<vmem>>, %arg7: memref<1x32x4xbf16, #tpu.memory_space<vmem>>, %arg8: memref<1x4x32xbf16, #tpu.memory_space<vmem>>, %arg9: memref<1x32xf32, #tpu.memory_space<vmem>>, %arg10: memref<1x8x32xf32, #tpu.memory_space<vmem>>, %arg11: memref<1x8x32xf32, #tpu.memory_space<vmem>>) attributes {dimension_semantics = [#tpu.dimension_semantics<parallel>, #tpu.dimension_semantics<arbitrary>], iteration_bounds = array<i64: 2, 8>, scalar_prefetch = 0 : i64, scratch_operands = 1 : i64, tpu.core_type = #tpu.core_type<tc>, window_params = [{transform_indices = @transform_0, window_bounds = array<i64: 1, 8, 32>}, {transform_indices = @transform_1, window_bounds = array<i64: 1, 8, 32>}, {transform_indices = @transform_2, window_bounds = array<i64: 1, 8, 32>}, {transform_indices = @transform_3, window_bounds = array<i64: 1, 32, 4>}, {transform_indices = @transform_4, window_bounds = array<i64: 1, 32, 4>}, {transform_indices = @transform_5, window_bounds = array<i64: 1, 32, 4>}, {transform_indices = @transform_6, window_bounds = array<i64: 1, 4, 32>}, {pipeline_mode = #tpu.pipeline_mode<synchronous>, transform_indices = @transform_7, window_bounds = array<i64: 1, 32>}, {transform_indices = @transform_8, window_bounds = array<i64: 1, 8, 32>}]} {
    %c0_i32 = arith.constant 0 : i32
    %0 = arith.cmpi eq, %arg1, %c0_i32 : i32
    %1 = arith.extui %0 : i1 to i32
    %c0_i32_0 = arith.constant 0 : i32
    %2 = arith.cmpi ne, %1, %c0_i32_0 : i32
    scf.if %2 {
      %cst_35 = arith.constant 0.000000e+00 : f32
      %48 = vector.broadcast %cst_35 : f32 to vector<1x8x32xf32>
      %c0_36 = arith.constant 0 : index
      %c0_37 = arith.constant 0 : index
      %c0_38 = arith.constant 0 : index
      %49 = vector.load %arg11[%c0_36, %c0_37, %c0_38] : memref<1x8x32xf32, #tpu.memory_space<vmem>>, vector<1x8x32xf32>
      tpu.vector_store %arg11[%c0_36, %c0_37, %c0_38], %48 {strides = array<i32>} : memref<1x8x32xf32, #tpu.memory_space<vmem>>, vector<1x8x32xf32>,
    } else {
    }
    %c0 = arith.constant 0 : index
    %c0_1 = arith.constant 0 : index
    %c0_2 = arith.constant 0 : index
    %3 = vector.load %arg2[%c0, %c0_1, %c0_2] : memref<1x8x32xbf16, #tpu.memory_space<vmem>>, vector<1x8x32xbf16>
    %4 = vector.shape_cast %3 : vector<1x8x32xbf16> to vector<8x32xbf16>
    %c0_3 = arith.constant 0 : index
    %c0_4 = arith.constant 0 : index
    %c0_5 = arith.constant 0 : index
    %5 = vector.load %arg3[%c0_3, %c0_4, %c0_5] : memref<1x8x32xbf16, #tpu.memory_space<vmem>>, vector<1x8x32xbf16>
    %6 = vector.shape_cast %5 : vector<1x8x32xbf16> to vector<8x32xbf16>
    %c0_6 = arith.constant 0 : index
    %c0_7 = arith.constant 0 : index
    %c0_8 = arith.constant 0 : index
    %7 = vector.load %arg4[%c0_6, %c0_7, %c0_8] : memref<1x8x32xbf16, #tpu.memory_space<vmem>>, vector<1x8x32xbf16>
    %8 = vector.shape_cast %7 : vector<1x8x32xbf16> to vector<8x32xbf16>
    %c0_9 = arith.constant 0 : index
    %c0_10 = arith.constant 0 : index
    %c0_11 = arith.constant 0 : index
    %9 = vector.load %arg5[%c0_9, %c0_10, %c0_11] : memref<1x32x4xbf16, #tpu.memory_space<vmem>>, vector<1x32x4xbf16>
    %10 = vector.shape_cast %9 : vector<1x32x4xbf16> to vector<32x4xbf16>
    %cst = arith.constant dense<0.000000e+00> : vector<8x4xf32>
    %11 = tpu.matmul %4, %10, %cst {dimension_numbers = #tpu.dot_dimension_numbers<[1], [0], [0], [1], [0, 0, 1, 1], [], []>} : vector<8x32xbf16>, vector<32x4xbf16>, vector<8x4xf32> -> vector<8x4xf32>
    %c0_12 = arith.constant 0 : index
    %c0_13 = arith.constant 0 : index
    %c0_14 = arith.constant 0 : index
    %12 = vector.load %arg6[%c0_12, %c0_13, %c0_14] : memref<1x32x4xbf16, #tpu.memory_space<vmem>>, vector<1x32x4xbf16>
    %13 = vector.shape_cast %12 : vector<1x32x4xbf16> to vector<32x4xbf16>
    %cst_15 = arith.constant dense<0.000000e+00> : vector<8x4xf32>
    %14 = tpu.matmul %6, %13, %cst_15 {dimension_numbers = #tpu.dot_dimension_numbers<[1], [0], [0], [1], [0, 0, 1, 1], [], []>} : vector<8x32xbf16>, vector<32x4xbf16>, vector<8x4xf32> -> vector<8x4xf32>
    %c0_16 = arith.constant 0 : index
    %c0_17 = arith.constant 0 : index
    %c0_18 = arith.constant 0 : index
    %15 = vector.load %arg7[%c0_16, %c0_17, %c0_18] : memref<1x32x4xbf16, #tpu.memory_space<vmem>>, vector<1x32x4xbf16>
    %16 = vector.shape_cast %15 : vector<1x32x4xbf16> to vector<32x4xbf16>
    %cst_19 = arith.constant dense<0.000000e+00> : vector<8x4xf32>
    %17 = tpu.matmul %8, %16, %cst_19 {dimension_numbers = #tpu.dot_dimension_numbers<[1], [0], [0], [1], [0, 0, 1, 1], [], []>} : vector<8x32xbf16>, vector<32x4xbf16>, vector<8x4xf32> -> vector<8x4xf32>
    %18 = arith.truncf %11 : vector<8x4xf32> to vector<8x4xbf16>
    %19 = vector.shape_cast %18 : vector<8x4xbf16> to vector<1x8x4xbf16>
    %20 = arith.truncf %14 : vector<8x4xf32> to vector<8x4xbf16>
    %21 = vector.shape_cast %20 : vector<8x4xbf16> to vector<1x8x4xbf16>
    %22 = arith.truncf %17 : vector<8x4xf32> to vector<8x4xbf16>
    %23 = vector.shape_cast %22 : vector<8x4xbf16> to vector<1x8x4xbf16>
    "tpu.trace_start"() <{level = 10 : i32, message = "bnd,bmd->bnm"}> : () -> ()
    %cst_20 = arith.constant dense<0.000000e+00> : vector<1x8x8xf32>
    %24 = tpu.matmul %19, %21, %cst_20 {dimension_numbers = #tpu.dot_dimension_numbers<[2], [2], [1], [1], [0, 0, 0, 1, 1, 1], [0], [0]>} : vector<1x8x4xbf16>, vector<1x8x4xbf16>, vector<1x8x8xf32> -> vector<1x8x8xf32>
    "tpu.trace_stop"() : () -> ()
    %cst_21 = arith.constant dense<0xFF800000> : vector<1x8xf32>
    %25 = vector.multi_reduction <maximumf>, %24, %cst_21 [2] : vector<1x8x8xf32> to vector<1x8xf32>
    %26 = vector.shape_cast %25 : vector<1x8xf32> to vector<1x8x1xf32>
    %27 = vector.broadcast %26 : vector<1x8x1xf32> to vector<1x8x8xf32>
    %28 = arith.subf %24, %27 : vector<1x8x8xf32>
    %29 = math.exp %28 : vector<1x8x8xf32>
    %cst_22 = arith.constant dense<0.000000e+00> : vector<1x8xf32>
    %30 = vector.multi_reduction <add>, %29, %cst_22 [2] : vector<1x8x8xf32> to vector<1x8xf32>
    %31 = vector.shape_cast %30 : vector<1x8xf32> to vector<1x8x1xf32>
    %32 = vector.broadcast %31 : vector<1x8x1xf32> to vector<1x8x8xf32>
    %33 = arith.divf %29, %32 : vector<1x8x8xf32>
    %34 = arith.truncf %33 : vector<1x8x8xf32> to vector<1x8x8xbf16>
    "tpu.trace_start"() <{level = 10 : i32, message = "bnm,bmd->bnd"}> : () -> ()
    %cst_23 = arith.constant dense<0.000000e+00> : vector<1x8x4xf32>
    %35 = tpu.matmul %34, %23, %cst_23 {dimension_numbers = #tpu.dot_dimension_numbers<[2], [1], [1], [2], [0, 0, 0, 1, 1, 2], [0], [0]>} : vector<1x8x8xbf16>, vector<1x8x4xbf16>, vector<1x8x4xf32> -> vector<1x8x4xf32>
    "tpu.trace_stop"() : () -> ()
    %36 = vector.shape_cast %35 : vector<1x8x4xf32> to vector<8x4xf32>
    %37 = arith.truncf %36 : vector<8x4xf32> to vector<8x4xbf16>
    %c0_24 = arith.constant 0 : index
    %c0_25 = arith.constant 0 : index
    %c0_26 = arith.constant 0 : index
    %38 = vector.load %arg8[%c0_24, %c0_25, %c0_26] : memref<1x4x32xbf16, #tpu.memory_space<vmem>>, vector<1x4x32xbf16>
    %39 = vector.shape_cast %38 : vector<1x4x32xbf16> to vector<4x32xbf16>
    %cst_27 = arith.constant dense<0.000000e+00> : vector<8x32xf32>
    %40 = tpu.matmul %37, %39, %cst_27 {dimension_numbers = #tpu.dot_dimension_numbers<[1], [0], [0], [1], [0, 0, 1, 1], [], []>} : vector<8x4xbf16>, vector<4x32xbf16>, vector<8x32xf32> -> vector<8x32xf32>
    %c0_28 = arith.constant 0 : index
    %c0_29 = arith.constant 0 : index
    %c0_30 = arith.constant 0 : index
    %41 = vector.load %arg11[%c0_28, %c0_29, %c0_30] : memref<1x8x32xf32, #tpu.memory_space<vmem>>, vector<1x8x32xf32>
    %42 = vector.shape_cast %40 : vector<8x32xf32> to vector<1x8x32xf32>
    %43 = arith.addf %41, %42 : vector<1x8x32xf32>
    %c0_31 = arith.constant 0 : index
    %c0_32 = arith.constant 0 : index
    %c0_33 = arith.constant 0 : index
    %44 = vector.load %arg11[%c0_31, %c0_32, %c0_33] : memref<1x8x32xf32, #tpu.memory_space<vmem>>, vector<1x8x32xf32>
    tpu.vector_store %arg11[%c0_31, %c0_32, %c0_33], %43 {strides = array<i32>} : memref<1x8x32xf32, #tpu.memory_space<vmem>>, vector<1x8x32xf32>,
    %c7_i32 = arith.constant 7 : i32
    %45 = arith.cmpi eq, %arg1, %c7_i32 : i32
    %46 = arith.extui %45 : i1 to i32
    %c0_i32_34 = arith.constant 0 : i32
    %47 = arith.cmpi ne, %46, %c0_i32_34 : i32
    scf.if %47 {
      %c0_35 = arith.constant 0 : index
      %c0_36 = arith.constant 0 : index
      %c0_37 = arith.constant 0 : index
      %48 = vector.load %arg11[%c0_35, %c0_36, %c0_37] : memref<1x8x32xf32, #tpu.memory_space<vmem>>, vector<1x8x32xf32>
      %c0_38 = arith.constant 0 : index
      %c0_39 = arith.constant 0 : index
      %49 = vector.load %arg9[%c0_38, %c0_39] : memref<1x32xf32, #tpu.memory_space<vmem>>, vector<1x32xf32>
      %50 = vector.shape_cast %49 : vector<1x32xf32> to vector<1x1x32xf32>
      %51 = vector.broadcast %50 : vector<1x1x32xf32> to vector<1x8x32xf32>
      %52 = arith.addf %48, %51 : vector<1x8x32xf32>
      %c0_40 = arith.constant 0 : index
      %c0_41 = arith.constant 0 : index
      %c0_42 = arith.constant 0 : index
      %53 = vector.load %arg10[%c0_40, %c0_41, %c0_42] : memref<1x8x32xf32, #tpu.memory_space<vmem>>, vector<1x8x32xf32>
      tpu.vector_store %arg10[%c0_40, %c0_41, %c0_42], %52 {strides = array<i32>} : memref<1x8x32xf32, #tpu.memory_space<vmem>>, vector<1x8x32xf32>,
    } else {
    }
    return
  }
  func.func @transform_0(%arg0: i32, %arg1: i32) -> (i32, i32, i32) {
    %c0_i32 = arith.constant 0 : i32
    %c0_i32_0 = arith.constant 0 : i32
    %c0_i32_1 = arith.constant 0 : i32
    return %arg0, %c0_i32, %c0_i32_0 : i32, i32, i32
  }
  func.func @transform_1(%arg0: i32, %arg1: i32) -> (i32, i32, i32) {
    %c0_i32 = arith.constant 0 : i32
    %c0_i32_0 = arith.constant 0 : i32
    %c0_i32_1 = arith.constant 0 : i32
    return %arg0, %c0_i32, %c0_i32_0 : i32, i32, i32
  }
  func.func @transform_2(%arg0: i32, %arg1: i32) -> (i32, i32, i32) {
    %c0_i32 = arith.constant 0 : i32
    %c0_i32_0 = arith.constant 0 : i32
    %c0_i32_1 = arith.constant 0 : i32
    return %arg0, %c0_i32, %c0_i32_0 : i32, i32, i32
  }
  func.func @transform_3(%arg0: i32, %arg1: i32) -> (i32, i32, i32) {
    %c0_i32 = arith.constant 0 : i32
    %c0_i32_0 = arith.constant 0 : i32
    %c0_i32_1 = arith.constant 0 : i32
    return %arg1, %c0_i32, %c0_i32_0 : i32, i32, i32
  }
  func.func @transform_4(%arg0: i32, %arg1: i32) -> (i32, i32, i32) {
    %c0_i32 = arith.constant 0 : i32
    %c0_i32_0 = arith.constant 0 : i32
    %c0_i32_1 = arith.constant 0 : i32
    return %arg1, %c0_i32, %c0_i32_0 : i32, i32, i32
  }
  func.func @transform_5(%arg0: i32, %arg1: i32) -> (i32, i32, i32) {
    %c0_i32 = arith.constant 0 : i32
    %c0_i32_0 = arith.constant 0 : i32
    %c0_i32_1 = arith.constant 0 : i32
    return %arg1, %c0_i32, %c0_i32_0 : i32, i32, i32
  }
  func.func @transform_6(%arg0: i32, %arg1: i32) -> (i32, i32, i32) {
    %c0_i32 = arith.constant 0 : i32
    %c0_i32_0 = arith.constant 0 : i32
    %c0_i32_1 = arith.constant 0 : i32
    return %arg1, %c0_i32, %c0_i32_0 : i32, i32, i32
  }
  func.func @transform_7(%arg0: i32, %arg1: i32) -> (i32, i32) {
    %c0_i32 = arith.constant 0 : i32
    %c0_i32_0 = arith.constant 0 : i32
    %c0_i32_1 = arith.constant 0 : i32
    return %c0_i32, %c0_i32_0 : i32, i32
  }
  func.func @transform_8(%arg0: i32, %arg1: i32) -> (i32, i32, i32) {
    %c0_i32 = arith.constant 0 : i32
    %c0_i32_0 = arith.constant 0 : i32
    %c0_i32_1 = arith.constant 0 : i32
    return %arg0, %c0_i32, %c0_i32_0 : i32, i32, i32
  }
}

</mosaic_0001>

<llo_original>
// kernel: tpu_custom_call.1
$region0: #{tpu_custom_call.1}
  #allocation0 [shape = 'u32[]', space=smem, size = 0x4, offset = 0x4, fixed_abs, tag = 'smem constant byte address 0x4 - core index']
  #allocation1 [shape = 'u32[144,128]{1,0:T(1,128)}', space=vmem, size = 0x12000, scoped, tag = 'internal scratch']
  #allocation2 [shape = 'f32[1,8,32]{2,1,0:T(8,128)}', space=vmem, size = 0x1000, scoped, tag = 'scratch operand']
  %s0 = inlined_call_operand.vmem [shape: bf16[2,8,32], index: 0, kind: input, shape index: {}]
  %s1 = inlined_call_operand.vmem [shape: bf16[2,8,32], index: 1, kind: input, shape index: {}]
  %s2 = inlined_call_operand.vmem [shape: bf16[2,8,32], index: 2, kind: input, shape index: {}]
  %s3 = inlined_call_operand.vmem [shape: bf16[8,32,4], index: 3, kind: input, shape index: {}]
  %s4 = inlined_call_operand.vmem [shape: bf16[8,32,4], index: 4, kind: input, shape index: {}]
  %s5 = inlined_call_operand.vmem [shape: bf16[8,32,4], index: 5, kind: input, shape index: {}]
  %s6 = inlined_call_operand.vmem [shape: bf16[8,4,32], index: 6, kind: input, shape index: {}]
  %s7 = inlined_call_operand.vmem [shape: f32[1,32], index: 7, kind: input, shape index: {}]
  %s8 = inlined_call_operand.hbm [shape: f32[2,8,32], index: 8, kind: output, shape index: {}]
  %s9 = sld [smem:[#allocation0]]
  $region73: #{tpu_custom_call.1} parent=0
    _
  %s11 = ssub.s32 1, %s9
  %s12 = scalar_select 0, %s11, %s9
  $region1: #{tpu_custom_call.1} parent=0
    #allocation3 [shape = 'u8[8192]{0}', space=vmem, size = 0x2000, scoped, tag = 'output window, operand 0']
    #allocation4 [shape = 's32[2]{0}', space=sflag, size = 0x8, scoped, tag = 'scoped memory for tpu_custom_call.1']
    %13 = vsyncpa [#allocation4], 0
    %s14 = scalar_lea.sflag [#allocation4], 1
    %15 = vsyncpa %s14, 0
    loop: start=0, step=1, limit=18
    $region2: #{tpu_custom_call.1} parent=1 // loop_pre_header
      _
    $region3: #{tpu_custom_call.1} parent=1 // loop_header
      %s17 = sphi 0, %s21
      %p18 = scmp.ge.s32.totalorder %s17, 18
      %s24 = sphi 0, %s36
      %s25 = sphi 0, %s32
      %s26 = sphi 0, %s24
      %s27 = sphi 0, %s25
      %s28 = sphi 0, %s26
      %s29 = sphi 0, %s27
      %s39 = sphi 0, %s41
      %s42 = sphi 0, %s39
      %s43 = sphi 0, %s42
      %s59 = sphi 0, %s43
      %s65 = sphi 0, %s67
      %s68 = sphi 0, %s65
      %s69 = sphi 0, %s68
      %s85 = sphi 0, %s69
      %s91 = sphi 0, %s93
      %s94 = sphi 0, %s91
      %s95 = sphi 0, %s94
      %s111 = sphi 0, %s95
      %s117 = sphi 0, %s119
      %s120 = sphi 0, %s117
      %s121 = sphi 0, %s120
      %s137 = sphi 0, %s121
      %s143 = sphi 0, %s145
      %s146 = sphi 0, %s143
      %s147 = sphi 0, %s146
      %s163 = sphi 0, %s147
      %s169 = sphi 0, %s171
      %s172 = sphi 0, %s169
      %s173 = sphi 0, %s172
      %s189 = sphi 0, %s173
      %s195 = sphi 0, %s197
      %s198 = sphi 0, %s195
      %s199 = sphi 0, %s198
      %s215 = sphi 0, %s199
      %s219 = sphi 0, %s219
      %s221 = sphi 0, %s219
      %s222 = sphi 0, %s221
      %s236 = sphi 0, %s222
      %s242 = sphi 0, %s244
      %s245 = sphi 0, %s242
      %s246 = sphi 0, %s245
      %s262 = sphi 0, %s246
    $region4: #{tpu_custom_call.1} parent=1 // loop_header_branch
      %20 = sbr.rel (%p18) target = $region8
    $region5: #{tpu_custom_call.1} parent=1 // loop_body
      %s22 = ssub.s32 %s17, 1
      %s23 = ssub.s32 %s17, 2
      %s30 = sadd.s32 1, %s25
      %p31 = scmp.ge.s32.totalorder %s30, 8
      %s32 = scalar_select %p31, 0, %s30
      %s33 = sadd.s32 1, %s24
      %s34 = scalar_select %p31, %s33, %s24
      %p35 = scmp.ge.s32.totalorder %s34, 2
      %s36 = scalar_select %p35, 0, %s34
      %s37 = ssub.s32 %s24, %s36
      %p38 = scmp.eq.s32.totalorder %s37, 0
      %s40 = sadd.s32 %s39, 1
      %s41 = scalar_select %p38, %s39, %s40
      %p44 = pneg %p38
      %p45 = scmp.eq.s32.totalorder %s17, 15
      %p46 = por %p44, %p45
      %p47 = scmp.ne.s32.totalorder %s39, %s42
      %p48 = scmp.eq.s32.totalorder %s17, 0
      %p49 = por %p47, %p48
      %p50 = scmp.ne.s32.totalorder %s39, %s42
      %p51 = scmp.eq.s32.totalorder %s22, 15
      %p52 = por %p50, %p51
      %p53 = scmp.ne.s32.totalorder %s42, %s43
      %p54 = scmp.eq.s32.totalorder %s22, 0
      %p55 = por %p53, %p54
      %p56 = scmp.ne.s32.totalorder %s42, %s43
      %p57 = scmp.eq.s32.totalorder %s23, 15
      %p58 = por %p56, %p57
      %p60 = scmp.ne.s32.totalorder %s43, %s59
      %p61 = scmp.eq.s32.totalorder %s23, 0
      %p62 = por %p60, %p61
      %s63 = ssub.s32 %s24, %s36
      %p64 = scmp.eq.s32.totalorder %s63, 0
      %s66 = sadd.s32 %s65, 1
      %s67 = scalar_select %p64, %s65, %s66
      %p70 = pneg %p64
      %p71 = scmp.eq.s32.totalorder %s17, 15
      %p72 = por %p70, %p71
      %p73 = scmp.ne.s32.totalorder %s65, %s68
      %p74 = scmp.eq.s32.totalorder %s17, 0
      %p75 = por %p73, %p74
      %p76 = scmp.ne.s32.totalorder %s65, %s68
      %p77 = scmp.eq.s32.totalorder %s22, 15
      %p78 = por %p76, %p77
      %p79 = scmp.ne.s32.totalorder %s68, %s69
      %p80 = scmp.eq.s32.totalorder %s22, 0
      %p81 = por %p79, %p80
      %p82 = scmp.ne.s32.totalorder %s68, %s69
      %p83 = scmp.eq.s32.totalorder %s23, 15
      %p84 = por %p82, %p83
      %p86 = scmp.ne.s32.totalorder %s69, %s85
      %p87 = scmp.eq.s32.totalorder %s23, 0
      %p88 = por %p86, %p87
      %s89 = ssub.s32 %s24, %s36
      %p90 = scmp.eq.s32.totalorder %s89, 0
      %s92 = sadd.s32 %s91, 1
      %s93 = scalar_select %p90, %s91, %s92
      %p96 = pneg %p90
      %p97 = scmp.eq.s32.totalorder %s17, 15
      %p98 = por %p96, %p97
      %p99 = scmp.ne.s32.totalorder %s91, %s94
      %p100 = scmp.eq.s32.totalorder %s17, 0
      %p101 = por %p99, %p100
      %p102 = scmp.ne.s32.totalorder %s91, %s94
      %p103 = scmp.eq.s32.totalorder %s22, 15
      %p104 = por %p102, %p103
      %p105 = scmp.ne.s32.totalorder %s94, %s95
      %p106 = scmp.eq.s32.totalorder %s22, 0
      %p107 = por %p105, %p106
      %p108 = scmp.ne.s32.totalorder %s94, %s95
      %p109 = scmp.eq.s32.totalorder %s23, 15
      %p110 = por %p108, %p109
      %p112 = scmp.ne.s32.totalorder %s95, %s111
      %p113 = scmp.eq.s32.totalorder %s23, 0
      %p114 = por %p112, %p113
      %s115 = ssub.s32 %s25, %s32
      %p116 = scmp.eq.s32.totalorder %s115, 0
      %s118 = sadd.s32 %s117, 1
      %s119 = scalar_select %p116, %s117, %s118
      %p122 = pneg %p116
      %p123 = scmp.eq.s32.totalorder %s17, 15
      %p124 = por %p122, %p123
      %p125 = scmp.ne.s32.totalorder %s117, %s120
      %p126 = scmp.eq.s32.totalorder %s17, 0
      %p127 = por %p125, %p126
      %p128 = scmp.ne.s32.totalorder %s117, %s120
      %p129 = scmp.eq.s32.totalorder %s22, 15
      %p130 = por %p128, %p129
      %p131 = scmp.ne.s32.totalorder %s120, %s121
      %p132 = scmp.eq.s32.totalorder %s22, 0
      %p133 = por %p131, %p132
      %p134 = scmp.ne.s32.totalorder %s120, %s121
      %p135 = scmp.eq.s32.totalorder %s23, 15
      %p136 = por %p134, %p135
      %p138 = scmp.ne.s32.totalorder %s121, %s137
      %p139 = scmp.eq.s32.totalorder %s23, 0
      %p140 = por %p138, %p139
      %s141 = ssub.s32 %s25, %s32
      %p142 = scmp.eq.s32.totalorder %s141, 0
      %s144 = sadd.s32 %s143, 1
      %s145 = scalar_select %p142, %s143, %s144
      %p148 = pneg %p142
      %p149 = scmp.eq.s32.totalorder %s17, 15
      %p150 = por %p148, %p149
      %p151 = scmp.ne.s32.totalorder %s143, %s146
      %p152 = scmp.eq.s32.totalorder %s17, 0
      %p153 = por %p151, %p152
      %p154 = scmp.ne.s32.totalorder %s143, %s146
      %p155 = scmp.eq.s32.totalorder %s22, 15
      %p156 = por %p154, %p155
      %p157 = scmp.ne.s32.totalorder %s146, %s147
      %p158 = scmp.eq.s32.totalorder %s22, 0
      %p159 = por %p157, %p158
      %p160 = scmp.ne.s32.totalorder %s146, %s147
      %p161 = scmp.eq.s32.totalorder %s23, 15
      %p162 = por %p160, %p161
      %p164 = scmp.ne.s32.totalorder %s147, %s163
      %p165 = scmp.eq.s32.totalorder %s23, 0
      %p166 = por %p164, %p165
      %s167 = ssub.s32 %s25, %s32
      %p168 = scmp.eq.s32.totalorder %s167, 0
      %s170 = sadd.s32 %s169, 1
      %s171 = scalar_select %p168, %s169, %s170
      %p174 = pneg %p168
      %p175 = scmp.eq.s32.totalorder %s17, 15
      %p176 = por %p174, %p175
      %p177 = scmp.ne.s32.totalorder %s169, %s172
      %p178 = scmp.eq.s32.totalorder %s17, 0
      %p179 = por %p177, %p178
      %p180 = scmp.ne.s32.totalorder %s169, %s172
      %p181 = scmp.eq.s32.totalorder %s22, 15
      %p182 = por %p180, %p181
      %p183 = scmp.ne.s32.totalorder %s172, %s173
      %p184 = scmp.eq.s32.totalorder %s22, 0
      %p185 = por %p183, %p184
      %p186 = scmp.ne.s32.totalorder %s172, %s173
      %p187 = scmp.eq.s32.totalorder %s23, 15
      %p188 = por %p186, %p187
      %p190 = scmp.ne.s32.totalorder %s173, %s189
      %p191 = scmp.eq.s32.totalorder %s23, 0
      %p192 = por %p190, %p191
      %s193 = ssub.s32 %s25, %s32
      %p194 = scmp.eq.s32.totalorder %s193, 0
      %s196 = sadd.s32 %s195, 1
      %s197 = scalar_select %p194, %s195, %s196
      %p200 = pneg %p194
      %p201 = scmp.eq.s32.totalorder %s17, 15
      %p202 = por %p200, %p201
      %p203 = scmp.ne.s32.totalorder %s195, %s198
      %p204 = scmp.eq.s32.totalorder %s17, 0
      %p205 = por %p203, %p204
      %p206 = scmp.ne.s32.totalorder %s195, %s198
      %p207 = scmp.eq.s32.totalorder %s22, 15
      %p208 = por %p206, %p207
      %p209 = scmp.ne.s32.totalorder %s198, %s199
      %p210 = scmp.eq.s32.totalorder %s22, 0
      %p211 = por %p209, %p210
      %p212 = scmp.ne.s32.totalorder %s198, %s199
      %p213 = scmp.eq.s32.totalorder %s23, 15
      %p214 = por %p212, %p213
      %p216 = scmp.ne.s32.totalorder %s199, %s215
      %p217 = scmp.eq.s32.totalorder %s23, 0
      %p218 = por %p216, %p217
      %s220 = sadd.s32 %s219, 1
      %p223 = scmp.eq.s32.totalorder %s17, 15
      %p224 = scmp.ne.s32.totalorder %s219, %s221
      %p225 = scmp.eq.s32.totalorder %s17, 0
      %p226 = por %p224, %p225
      %p227 = scmp.ne.s32.totalorder %s219, %s221
      %p228 = scmp.eq.s32.totalorder %s22, 15
      %p229 = por %p227, %p228
      %p230 = scmp.ne.s32.totalorder %s221, %s222
      %p231 = scmp.eq.s32.totalorder %s22, 0
      %p232 = por %p230, %p231
      %p233 = scmp.ne.s32.totalorder %s221, %s222
      %p234 = scmp.eq.s32.totalorder %s23, 15
      %p235 = por %p233, %p234
      %p237 = scmp.ne.s32.totalorder %s222, %s236
      %p238 = scmp.eq.s32.totalorder %s23, 0
      %p239 = por %p237, %p238
      %s240 = ssub.s32 %s24, %s36
      %p241 = scmp.eq.s32.totalorder %s240, 0
      %s243 = sadd.s32 %s242, 1
      %s244 = scalar_select %p241, %s242, %s243
      %p247 = pneg %p241
      %p248 = scmp.eq.s32.totalorder %s17, 15
      %p249 = por %p247, %p248
      %p250 = scmp.ne.s32.totalorder %s242, %s245
      %p251 = scmp.eq.s32.totalorder %s17, 0
      %p252 = por %p250, %p251
      %p253 = scmp.ne.s32.totalorder %s242, %s245
      %p254 = scmp.eq.s32.totalorder %s22, 15
      %p255 = por %p253, %p254
      %p256 = scmp.ne.s32.totalorder %s245, %s246
      %p257 = scmp.eq.s32.totalorder %s22, 0
      %p258 = por %p256, %p257
      %p259 = scmp.ne.s32.totalorder %s245, %s246
      %p260 = scmp.eq.s32.totalorder %s23, 15
      %p261 = por %p259, %p260
      %p263 = scmp.ne.s32.totalorder %s246, %s262
      %p264 = scmp.eq.s32.totalorder %s23, 0
      %p265 = por %p263, %p264
      %p266 = scmp.le.s32.totalorder 1, %s17
      %p267 = scmp.lt.s32.totalorder %s17, 17
      %p268 = pnand %p266, %p267
      %p269 = pneg %p268
      // Predicated region
      $region9: #{tpu_custom_call.1} parent=5 // pred_check
        _
      $region10: #{tpu_custom_call.1} parent=5 // pred_check_branch
        %271 = sbr.rel (%p268) target = $region12
      $region11: #{tpu_custom_call.1} parent=5 // pred_region
        %s272 = ssub.s32 %s17, 1
        // Predicated region
        $region13: #{tpu_custom_call.1} parent=11 // pred_check
          %p273 = pneg %p232
        $region14: #{tpu_custom_call.1} parent=11 // pred_check_branch
          %275 = sbr.rel (%p273) target = $region16
        $region15: #{tpu_custom_call.1} parent=11 // pred_region
          _
        $region16: #{tpu_custom_call.1} parent=11 // pred_fallthru
          _
      $region12: #{tpu_custom_call.1} parent=5 // pred_fallthru
        _
      %p276 = scmp.lt.s32.totalorder %s17, 16
      // Predicated region
      $region17: #{tpu_custom_call.1} parent=5 // pred_check
        %p277 = pneg %p276
      $region18: #{tpu_custom_call.1} parent=5 // pred_check_branch
        %279 = sbr.rel (%p277) target = $region20
      $region19: #{tpu_custom_call.1} parent=5 // pred_region
        // Predicated region
        $region21: #{tpu_custom_call.1} parent=19 // pred_check
          %p280 = pneg %p49
        $region22: #{tpu_custom_call.1} parent=19 // pred_check_branch
          %282 = sbr.rel (%p280) target = $region24
        $region23: #{tpu_custom_call.1} parent=19 // pred_region
          %p283 = scmp.lt.s32.totalorder %s24, 1
          %s284 = scalar_select %p283, %s24, 1
          %s285 = smul.addr %s284, 4
          %s286 = scalar_lea.vmem %s0, %s285
        $region24: #{tpu_custom_call.1} parent=19 // pred_fallthru
          _
        // Predicated region
        $region25: #{tpu_custom_call.1} parent=19 // pred_check
          %p287 = pneg %p75
        $region26: #{tpu_custom_call.1} parent=19 // pred_check_branch
          %289 = sbr.rel (%p287) target = $region28
        $region27: #{tpu_custom_call.1} parent=19 // pred_region
          %p290 = scmp.lt.s32.totalorder %s24, 1
          %s291 = scalar_select %p290, %s24, 1
          %s292 = smul.addr %s291, 4
          %s293 = scalar_lea.vmem %s1, %s292
        $region28: #{tpu_custom_call.1} parent=19 // pred_fallthru
          _
        // Predicated region
        $region29: #{tpu_custom_call.1} parent=19 // pred_check
          %p294 = pneg %p101
        $region30: #{tpu_custom_call.1} parent=19 // pred_check_branch
          %296 = sbr.rel (%p294) target = $region32
        $region31: #{tpu_custom_call.1} parent=19 // pred_region
          %p297 = scmp.lt.s32.totalorder %s24, 1
          %s298 = scalar_select %p297, %s24, 1
          %s299 = smul.addr %s298, 4
          %s300 = scalar_lea.vmem %s2, %s299
        $region32: #{tpu_custom_call.1} parent=19 // pred_fallthru
          _
        // Predicated region
        $region33: #{tpu_custom_call.1} parent=19 // pred_check
          %p301 = pneg %p127
        $region34: #{tpu_custom_call.1} parent=19 // pred_check_branch
          %303 = sbr.rel (%p301) target = $region36
        $region35: #{tpu_custom_call.1} parent=19 // pred_region
          %p304 = scmp.lt.s32.totalorder %s25, 7
          %s305 = scalar_select %p304, %s25, 7
          %s306 = smul.addr %s305, 4
          %s307 = smul.addr %s306, 4
          %s308 = scalar_lea.vmem %s3, %s307
        $region36: #{tpu_custom_call.1} parent=19 // pred_fallthru
          _
        // Predicated region
        $region37: #{tpu_custom_call.1} parent=19 // pred_check
          %p309 = pneg %p153
        $region38: #{tpu_custom_call.1} parent=19 // pred_check_branch
          %311 = sbr.rel (%p309) target = $region40
        $region39: #{tpu_custom_call.1} parent=19 // pred_region
          %p312 = scmp.lt.s32.totalorder %s25, 7
          %s313 = scalar_select %p312, %s25, 7
          %s314 = smul.addr %s313, 4
          %s315 = smul.addr %s314, 4
          %s316 = scalar_lea.vmem %s4, %s315
        $region40: #{tpu_custom_call.1} parent=19 // pred_fallthru
          _
        // Predicated region
        $region41: #{tpu_custom_call.1} parent=19 // pred_check
          %p317 = pneg %p179
        $region42: #{tpu_custom_call.1} parent=19 // pred_check_branch
          %319 = sbr.rel (%p317) target = $region44
        $region43: #{tpu_custom_call.1} parent=19 // pred_region
          %p320 = scmp.lt.s32.totalorder %s25, 7
          %s321 = scalar_select %p320, %s25, 7
          %s322 = smul.addr %s321, 4
          %s323 = smul.addr %s322, 4
          %s324 = scalar_lea.vmem %s5, %s323
        $region44: #{tpu_custom_call.1} parent=19 // pred_fallthru
          _
        // Predicated region
        $region45: #{tpu_custom_call.1} parent=19 // pred_check
          %p325 = pneg %p205
        $region46: #{tpu_custom_call.1} parent=19 // pred_check_branch
          %327 = sbr.rel (%p325) target = $region48
        $region47: #{tpu_custom_call.1} parent=19 // pred_region
          %p328 = scmp.lt.s32.totalorder %s25, 7
          %s329 = scalar_select %p328, %s25, 7
          %s330 = smul.addr %s329, 2
          %s331 = scalar_lea.vmem %s6, %s330
        $region48: #{tpu_custom_call.1} parent=19 // pred_fallthru
          _
      $region20: #{tpu_custom_call.1} parent=5 // pred_fallthru
        _
      %p332 = scmp.le.s32.totalorder 1, %s17
      %p333 = scmp.lt.s32.totalorder %s17, 17
      %p334 = pnand %p332, %p333
      %p335 = pneg %p334
      // Predicated region
      $region49: #{tpu_custom_call.1} parent=5 // pred_check
        _
      $region50: #{tpu_custom_call.1} parent=5 // pred_check_branch
        %337 = sbr.rel (%p334) target = $region52
      $region51: #{tpu_custom_call.1} parent=5 // pred_region
        %s338 = ssub.s32 %s17, 1
        %p339 = scmp.lt.s32.totalorder %s26, 1
        %s340 = scalar_select %p339, %s26, 1
        %s341 = smul.addr %s340, 4
        %s342 = scalar_lea.vmem %s0, %s341
        %p343 = pneg %p55
        %p344 = pneg %p52
        %p345 = scmp.lt.s32.totalorder %s26, 1
        %s346 = scalar_select %p345, %s26, 1
        %s347 = smul.addr %s346, 4
        %s348 = scalar_lea.vmem %s1, %s347
        %p349 = pneg %p81
        %p350 = pneg %p78
        %p351 = scmp.lt.s32.totalorder %s26, 1
        %s352 = scalar_select %p351, %s26, 1
        %s353 = smul.addr %s352, 4
        %s354 = scalar_lea.vmem %s2, %s353
        %p355 = pneg %p107
        %p356 = pneg %p104
        %p357 = scmp.lt.s32.totalorder %s27, 7
        %s358 = scalar_select %p357, %s27, 7
        %s359 = smul.addr %s358, 4
        %s360 = smul.addr %s359, 4
        %s361 = scalar_lea.vmem %s3, %s360
        %p362 = pneg %p133
        %p363 = pneg %p130
        %p364 = scmp.lt.s32.totalorder %s27, 7
        %s365 = scalar_select %p364, %s27, 7
        %s366 = smul.addr %s365, 4
        %s367 = smul.addr %s366, 4
        %s368 = scalar_lea.vmem %s4, %s367
        %p369 = pneg %p159
        %p370 = pneg %p156
        %p371 = scmp.lt.s32.totalorder %s27, 7
        %s372 = scalar_select %p371, %s27, 7
        %s373 = smul.addr %s372, 4
        %s374 = smul.addr %s373, 4
        %s375 = scalar_lea.vmem %s5, %s374
        %p376 = pneg %p185
        %p377 = pneg %p182
        %p378 = scmp.lt.s32.totalorder %s27, 7
        %s379 = scalar_select %p378, %s27, 7
        %s380 = smul.addr %s379, 2
        %s381 = scalar_lea.vmem %s6, %s380
        %p382 = pneg %p211
        %p383 = pneg %p208
        %p384 = pneg %p232
        %p385 = pneg %p229
        %p386 = pneg %p258
        %p387 = pneg %p255
        %s388 = sand.u32 %s245, 1
        %s389 = scalar_lea.sflag [#allocation4], %s388
        %s390 = sand.u32 %s245, 1
        %s391 = smul.addr %s390, 8
        %s392 = scalar_lea.vmem [#allocation3], %s391
        %p393 = scmp.lt.s32.totalorder %s26, 1
        %s394 = scalar_select %p393, %s26, 1
        %s395 = smul.addr %s394, 4
        %s396 = scalar_lea.vmem %s0, %s395
        %p397 = scmp.lt.s32.totalorder %s26, 1
        %s398 = scalar_select %p397, %s26, 1
        %s399 = smul.addr %s398, 4
        %s400 = scalar_lea.vmem %s1, %s399
        %p401 = scmp.lt.s32.totalorder %s26, 1
        %s402 = scalar_select %p401, %s26, 1
        %s403 = smul.addr %s402, 4
        %s404 = scalar_lea.vmem %s2, %s403
        %p405 = scmp.lt.s32.totalorder %s27, 7
        %s406 = scalar_select %p405, %s27, 7
        %s407 = smul.addr %s406, 4
        %s408 = smul.addr %s407, 4
        %s409 = scalar_lea.vmem %s3, %s408
        %p410 = scmp.lt.s32.totalorder %s27, 7
        %s411 = scalar_select %p410, %s27, 7
        %s412 = smul.addr %s411, 4
        %s413 = smul.addr %s412, 4
        %s414 = scalar_lea.vmem %s4, %s413
        %p415 = scmp.lt.s32.totalorder %s27, 7
        %s416 = scalar_select %p415, %s27, 7
        %s417 = smul.addr %s416, 4
        %s418 = smul.addr %s417, 4
        %s419 = scalar_lea.vmem %s5, %s418
        %p420 = scmp.lt.s32.totalorder %s27, 7
        %s421 = scalar_select %p420, %s27, 7
        %s422 = smul.addr %s421, 2
        %s423 = scalar_lea.vmem %s6, %s422
        %p425 = scmp.eq.s32.totalorder %s27, 0
        // Predicated region
        $region53: #{tpu_custom_call.1} parent=51 // pred_check
          %p426 = pneg %p425
        $region54: #{tpu_custom_call.1} parent=51 // pred_check_branch
          %428 = sbr.rel (%p426) target = $region56
        $region55: #{tpu_custom_call.1} parent=51 // pred_region
          %vm429 = vcmask 261120
          %430 = vst.msk [vmem:[#allocation2] sm:$0xff] %vm429, 0.0
        $region56: #{tpu_custom_call.1} parent=51 // pred_fallthru
          _
        %v431 = vld [vmem:[%s396] sm:$0xf]
        %v432 = vld [vmem:[%s400] sm:$0xf]
        %v433 = vld [vmem:[%s404] sm:$0xf]
        %v434 = vld [vmem:[%s409] sm:$0xf]
        %v435 = vld [vmem:[%s409 + $0x4] sm:$0xf]
        %v436 = vld [vmem:[%s409 + $0x8] sm:$0xf]
        %v437 = vld [vmem:[%s409 + $0xc] sm:$0xf]
        %v442 = vunpack.c.l.b16 %v434
        %v443 = vunpack.c.l.b16 %v435
        %v444 = vunpack.c.l.b16 %v436
        %v445 = vunpack.c.l.b16 %v437
        %v446 = vpack.c.b16 %v443, %v442
        %v447 = vpack.c.b16 %v445, %v444
        %vm450 = vcmask 261120
        %v452 = vsel %vm450, %v431, 0
        %454 = vmatprep.subr.bf16.mxu0 0
        %455 = vmatpush1.bf16.msra.mxu0 %v446
        %456 = vmatprep.subr.bf16.mxu0 0
        %457 = vmatpush1.bf16.msra.mxu0 %v447
        %458 = vmatprep.subr.bf16.mxu0 0
        %459 = vmatpush1.bf16.msra.mxu0 0
        %460 = vmatprep.subr.bf16.mxu0 0
        %461 = vmatpush1.bf16.msra.mxu0 0
        %462 = vmatprep.subr.bf16.mxu0 0
        %463 = vmatpush1.bf16.msra.mxu0 0
        %464 = vmatprep.subr.bf16.mxu0 0
        %465 = vmatpush1.bf16.msra.mxu0 0
        %466 = vmatprep.subr.bf16.mxu0 0
        %467 = vmatpush1.bf16.msra.mxu0 0
        %468 = vmatprep.subr.bf16.mxu0 0
        %469 = vmatpush1.bf16.msra.mxu0 0
        %470 = vmatprep.subr.bf16.mxu0 0
        %471 = vmatpush1.bf16.msra.mxu0 0
        %472 = vmatprep.subr.bf16.mxu0 0
        %473 = vmatpush1.bf16.msra.mxu0 0
        %474 = vmatprep.subr.bf16.mxu0 0
        %475 = vmatpush1.bf16.msra.mxu0 0
        %476 = vmatprep.subr.bf16.mxu0 0
        %477 = vmatpush1.bf16.msra.mxu0 0
        %478 = vmatprep.subr.bf16.mxu0 0
        %479 = vmatpush1.bf16.msra.mxu0 0
        %480 = vmatprep.subr.bf16.mxu0 0
        %481 = vmatpush1.bf16.msra.mxu0 0
        %482 = vmatprep.subr.bf16.mxu0 0
        %483 = vmatpush1.bf16.msra.mxu0 0
        %484 = vmatprep.subr.bf16.mxu0 0
        %485 = vmatpush1.bf16.msra.mxu0 0
        %486 = vmatprep.mubr.bf16.mxu0 0
        %487 = vmatmul.mubr.bf16.gmra.mrb[0].mxu0 %v452
        %v488 = vpop.f32.mrb[0].mxu0
        %v489 = vadd.f32 0.0, %v488
        %v490 = vpop.f32.mrb[0].mxu0
        %v491 = vpop.f32.mrb[0].mxu0
        %v492 = vpop.f32.mrb[0].mxu0
        %493 = vdwg.mxu0
        %v494 = vld [vmem:[%s414] sm:$0xf]
        %v495 = vld [vmem:[%s414 + $0x4] sm:$0xf]
        %v496 = vld [vmem:[%s414 + $0x8] sm:$0xf]
        %v497 = vld [vmem:[%s414 + $0xc] sm:$0xf]
        %v502 = vunpack.c.l.b16 %v494
        %v503 = vunpack.c.l.b16 %v495
        %v504 = vunpack.c.l.b16 %v496
        %v505 = vunpack.c.l.b16 %v497
        %v506 = vpack.c.b16 %v503, %v502
        %v507 = vpack.c.b16 %v505, %v504
        %v511 = vsel %vm450, %v432, 0
        %513 = vmatprep.subr.bf16.mxu0 0
        %514 = vmatpush1.bf16.msra.mxu0 %v506
        %515 = vmatprep.subr.bf16.mxu0 0
        %516 = vmatpush1.bf16.msra.mxu0 %v507
        %517 = vmatprep.subr.bf16.mxu0 0
        %518 = vmatpush1.bf16.msra.mxu0 0
        %519 = vmatprep.subr.bf16.mxu0 0
        %520 = vmatpush1.bf16.msra.mxu0 0
        %521 = vmatprep.subr.bf16.mxu0 0
        %522 = vmatpush1.bf16.msra.mxu0 0
        %523 = vmatprep.subr.bf16.mxu0 0
        %524 = vmatpush1.bf16.msra.mxu0 0
        %525 = vmatprep.subr.bf16.mxu0 0
        %526 = vmatpush1.bf16.msra.mxu0 0
        %527 = vmatprep.subr.bf16.mxu0 0
        %528 = vmatpush1.bf16.msra.mxu0 0
        %529 = vmatprep.subr.bf16.mxu0 0
        %530 = vmatpush1.bf16.msra.mxu0 0
        %531 = vmatprep.subr.bf16.mxu0 0
        %532 = vmatpush1.bf16.msra.mxu0 0
        %533 = vmatprep.subr.bf16.mxu0 0
        %534 = vmatpush1.bf16.msra.mxu0 0
        %535 = vmatprep.subr.bf16.mxu0 0
        %536 = vmatpush1.bf16.msra.mxu0 0
        %537 = vmatprep.subr.bf16.mxu0 0
        %538 = vmatpush1.bf16.msra.mxu0 0
        %539 = vmatprep.subr.bf16.mxu0 0
        %540 = vmatpush1.bf16.msra.mxu0 0
        %541 = vmatprep.subr.bf16.mxu0 0
        %542 = vmatpush1.bf16.msra.mxu0 0
        %543 = vmatprep.subr.bf16.mxu0 0
        %544 = vmatpush1.bf16.msra.mxu0 0
        %545 = vmatprep.mubr.bf16.mxu0 0
        %546 = vmatmul.mubr.bf16.gmra.mrb[0].mxu0 %v511
        %v547 = vpop.f32.mrb[0].mxu0
        %v548 = vadd.f32 0.0, %v547
        %v549 = vpop.f32.mrb[0].mxu0
        %v550 = vpop.f32.mrb[0].mxu0
        %v551 = vpop.f32.mrb[0].mxu0
        %552 = vdwg.mxu0
        %v553 = vld [vmem:[%s419] sm:$0xf]
        %v554 = vld [vmem:[%s419 + $0x4] sm:$0xf]
        %v555 = vld [vmem:[%s419 + $0x8] sm:$0xf]
        %v556 = vld [vmem:[%s419 + $0xc] sm:$0xf]
        %v561 = vunpack.c.l.b16 %v553
        %v562 = vunpack.c.l.b16 %v554
        %v563 = vunpack.c.l.b16 %v555
        %v564 = vunpack.c.l.b16 %v556
        %v565 = vpack.c.b16 %v562, %v561
        %v566 = vpack.c.b16 %v564, %v563
        %v570 = vsel %vm450, %v433, 0
        %572 = vmatprep.subr.bf16.mxu0 0
        %573 = vmatpush1.bf16.msra.mxu0 %v565
        %574 = vmatprep.subr.bf16.mxu0 0
        %575 = vmatpush1.bf16.msra.mxu0 %v566
        %576 = vmatprep.subr.bf16.mxu0 0
        %577 = vmatpush1.bf16.msra.mxu0 0
        %578 = vmatprep.subr.bf16.mxu0 0
        %579 = vmatpush1.bf16.msra.mxu0 0
        %580 = vmatprep.subr.bf16.mxu0 0
        %581 = vmatpush1.bf16.msra.mxu0 0
        %582 = vmatprep.subr.bf16.mxu0 0
        %583 = vmatpush1.bf16.msra.mxu0 0
        %584 = vmatprep.subr.bf16.mxu0 0
        %585 = vmatpush1.bf16.msra.mxu0 0
        %586 = vmatprep.subr.bf16.mxu0 0
        %587 = vmatpush1.bf16.msra.mxu0 0
        %588 = vmatprep.subr.bf16.mxu0 0
        %589 = vmatpush1.bf16.msra.mxu0 0
        %590 = vmatprep.subr.bf16.mxu0 0
        %591 = vmatpush1.bf16.msra.mxu0 0
        %592 = vmatprep.subr.bf16.mxu0 0
        %593 = vmatpush1.bf16.msra.mxu0 0
        %594 = vmatprep.subr.bf16.mxu0 0
        %595 = vmatpush1.bf16.msra.mxu0 0
        %596 = vmatprep.subr.bf16.mxu0 0
        %597 = vmatpush1.bf16.msra.mxu0 0
        %598 = vmatprep.subr.bf16.mxu0 0
        %599 = vmatpush1.bf16.msra.mxu0 0
        %600 = vmatprep.subr.bf16.mxu0 0
        %601 = vmatpush1.bf16.msra.mxu0 0
        %602 = vmatprep.subr.bf16.mxu0 0
        %603 = vmatpush1.bf16.msra.mxu0 0
        %604 = vmatprep.mubr.bf16.mxu0 0
        %605 = vmatmul.mubr.bf16.gmra.mrb[0].mxu0 %v570
        %v606 = vpop.f32.mrb[0].mxu0
        %v607 = vadd.f32 0.0, %v606
        %v608 = vpop.f32.mrb[0].mxu0
        %v609 = vpop.f32.mrb[0].mxu0
        %v610 = vpop.f32.mrb[0].mxu0
        %611 = vdwg.mxu0
        %v612 = vpack.c.bf16 %v489, %v489
        %v613 = vpack.c.bf16 %v548, %v548
        %v614 = vpack.c.bf16 %v607, %v607
        %vm615 = vcmask 31744
        %v617 = vsel %vm615, %v612, 0
        %v620 = vsel %vm615, %v613, 0
        %622 = vmatprep.subr.bf16.mxu0 0
        %623 = vmatpush1.bf16.xpose.msra.mxu0 %v620
        %624 = vmatprep.subr.bf16.mxu0 0
        %625 = vmatpush1.bf16.xpose.msra.mxu0 0
        %626 = vmatprep.subr.bf16.mxu0 0
        %627 = vmatpush1.bf16.xpose.msra.mxu0 0
        %628 = vmatprep.subr.bf16.mxu0 0
        %629 = vmatpush1.bf16.xpose.msra.mxu0 0
        %630 = vmatprep.subr.bf16.mxu0 0
        %631 = vmatpush1.bf16.xpose.msra.mxu0 0
        %632 = vmatprep.subr.bf16.mxu0 0
        %633 = vmatpush1.bf16.xpose.msra.mxu0 0
        %634 = vmatprep.subr.bf16.mxu0 0
        %635 = vmatpush1.bf16.xpose.msra.mxu0 0
        %636 = vmatprep.subr.bf16.mxu0 0
        %637 = vmatpush1.bf16.xpose.msra.mxu0 0
        %638 = vmatprep.subr.bf16.mxu0 0
        %639 = vmatpush1.bf16.xpose.msra.mxu0 0
        %640 = vmatprep.subr.bf16.mxu0 0
        %641 = vmatpush1.bf16.xpose.msra.mxu0 0
        %642 = vmatprep.subr.bf16.mxu0 0
        %643 = vmatpush1.bf16.xpose.msra.mxu0 0
        %644 = vmatprep.subr.bf16.mxu0 0
        %645 = vmatpush1.bf16.xpose.msra.mxu0 0
        %646 = vmatprep.subr.bf16.mxu0 0
        %647 = vmatpush1.bf16.xpose.msra.mxu0 0
        %648 = vmatprep.subr.bf16.mxu0 0
        %649 = vmatpush1.bf16.xpose.msra.mxu0 0
        %650 = vmatprep.subr.bf16.mxu0 0
        %651 = vmatpush1.bf16.xpose.msra.mxu0 0
        %652 = vmatprep.subr.bf16.mxu0 0
        %653 = vmatpush1.bf16.xpose.msra.mxu0 0
        %654 = vmatprep.mubr.bf16.mxu0 0
        %655 = vmatmul.mubr.bf16.gmra.mrb[0].mxu0 %v617
        %v656 = vpop.f32.mrb[0].mxu0
        %v657 = vadd.f32 0.0, %v656
        %v658 = vpop.f32.mrb[0].mxu0
        %v659 = vpop.f32.mrb[0].mxu0
        %v660 = vpop.f32.mrb[0].mxu0
        %661 = vdwg.mxu0
        %vm662 = vcmask 64512
        %v663 = vsel %vm662, %v657, -inf
        %664 = vmax.xlane.f32.xlu0 %v663
        %v665 = vpop.xlane.xlu0 %664
        %v666 = vsub.f32 %v657, %v665
        %v667 = vmul.f32 %v666, 1.442695
        %v668 = vpow.pop %v667
        %v669 = vsel %vm662, %v668, 0.0
        %670 = vadd.xlane.f32.xlu0 %v669
        %v671 = vpop.xlane.xlu0 %670
        %v672 = vrcp.pop %v671
        %v673 = vmul.f32 %v668, %v672
        %v674 = vpack.c.bf16 %v673, %v673
        %v676 = vsel %vm662, %v674, 0
        %vm678 = vcmask 1043456
        %v680 = vsel %vm678, %v614, 0
        %682 = vmatprep.subr.bf16.mxu0 0
        %683 = vmatpush1.bf16.msra.mxu0 %v680
        %684 = vmatprep.subr.bf16.mxu0 0
        %685 = vmatpush1.bf16.msra.mxu0 0
        %686 = vmatprep.subr.bf16.mxu0 0
        %687 = vmatpush1.bf16.msra.mxu0 0
        %688 = vmatprep.subr.bf16.mxu0 0
        %689 = vmatpush1.bf16.msra.mxu0 0
        %690 = vmatprep.subr.bf16.mxu0 0
        %691 = vmatpush1.bf16.msra.mxu0 0
        %692 = vmatprep.subr.bf16.mxu0 0
        %693 = vmatpush1.bf16.msra.mxu0 0
        %694 = vmatprep.subr.bf16.mxu0 0
        %695 = vmatpush1.bf16.msra.mxu0 0
        %696 = vmatprep.subr.bf16.mxu0 0
        %697 = vmatpush1.bf16.msra.mxu0 0
        %698 = vmatprep.subr.bf16.mxu0 0
        %699 = vmatpush1.bf16.msra.mxu0 0
        %700 = vmatprep.subr.bf16.mxu0 0
        %701 = vmatpush1.bf16.msra.mxu0 0
        %702 = vmatprep.subr.bf16.mxu0 0
        %703 = vmatpush1.bf16.msra.mxu0 0
        %704 = vmatprep.subr.bf16.mxu0 0
        %705 = vmatpush1.bf16.msra.mxu0 0
        %706 = vmatprep.subr.bf16.mxu0 0
        %707 = vmatpush1.bf16.msra.mxu0 0
        %708 = vmatprep.subr.bf16.mxu0 0
        %709 = vmatpush1.bf16.msra.mxu0 0
        %710 = vmatprep.subr.bf16.mxu0 0
        %711 = vmatpush1.bf16.msra.mxu0 0
        %712 = vmatprep.subr.bf16.mxu0 0
        %713 = vmatpush1.bf16.msra.mxu0 0
        %714 = vmatprep.mubr.bf16.mxu0 0
        %715 = vmatmul.mubr.bf16.gmra.mrb[0].mxu0 %v676
        %v716 = vpop.f32.mrb[0].mxu0
        %v717 = vadd.f32 0.0, %v716
        %v718 = vpop.f32.mrb[0].mxu0
        %v719 = vpop.f32.mrb[0].mxu0
        %v720 = vpop.f32.mrb[0].mxu0
        %721 = vdwg.mxu0
        %v722 = vpack.c.bf16 %v717, %v717
        %v723 = vld [vmem:[%s423] sm:$0x3]
        %v725 = vsel %vm615, %v722, 0
        %vm727 = vcmask 1041408
        %v729 = vsel %vm727, %v723, 0
        %731 = vmatprep.subr.bf16.mxu0 0
        %732 = vmatpush1.bf16.msra.mxu0 %v729
        %733 = vmatprep.subr.bf16.mxu0 0
        %734 = vmatpush1.bf16.msra.mxu0 0
        %735 = vmatprep.subr.bf16.mxu0 0
        %736 = vmatpush1.bf16.msra.mxu0 0
        %737 = vmatprep.subr.bf16.mxu0 0
        %738 = vmatpush1.bf16.msra.mxu0 0
        %739 = vmatprep.subr.bf16.mxu0 0
        %740 = vmatpush1.bf16.msra.mxu0 0
        %741 = vmatprep.subr.bf16.mxu0 0
        %742 = vmatpush1.bf16.msra.mxu0 0
        %743 = vmatprep.subr.bf16.mxu0 0
        %744 = vmatpush1.bf16.msra.mxu0 0
        %745 = vmatprep.subr.bf16.mxu0 0
        %746 = vmatpush1.bf16.msra.mxu0 0
        %747 = vmatprep.subr.bf16.mxu0 0
        %748 = vmatpush1.bf16.msra.mxu0 0
        %749 = vmatprep.subr.bf16.mxu0 0
        %750 = vmatpush1.bf16.msra.mxu0 0
        %751 = vmatprep.subr.bf16.mxu0 0
        %752 = vmatpush1.bf16.msra.mxu0 0
        %753 = vmatprep.subr.bf16.mxu0 0
        %754 = vmatpush1.bf16.msra.mxu0 0
        %755 = vmatprep.subr.bf16.mxu0 0
        %756 = vmatpush1.bf16.msra.mxu0 0
        %757 = vmatprep.subr.bf16.mxu0 0
        %758 = vmatpush1.bf16.msra.mxu0 0
        %759 = vmatprep.subr.bf16.mxu0 0
        %760 = vmatpush1.bf16.msra.mxu0 0
        %761 = vmatprep.subr.bf16.mxu0 0
        %762 = vmatpush1.bf16.msra.mxu0 0
        %763 = vmatprep.mubr.bf16.mxu0 0
        %764 = vmatmul.mubr.bf16.gmra.mrb[0].mxu0 %v725
        %v765 = vpop.f32.mrb[0].mxu0
        %v766 = vadd.f32 0.0, %v765
        %v767 = vpop.f32.mrb[0].mxu0
        %v768 = vpop.f32.mrb[0].mxu0
        %v769 = vpop.f32.mrb[0].mxu0
        %770 = vdwg.mxu0
        %v771 = vld [vmem:[#allocation2] sm:$0xff]
        %v772 = vadd.f32 %v771, %v766
        %773 = vst.msk [vmem:[#allocation2] sm:$0xff] %vm450, %v772
        %p774 = scmp.eq.s32.totalorder %s27, 7
        // Predicated region
        $region57: #{tpu_custom_call.1} parent=51 // pred_check
          %p775 = pneg %p774
        $region58: #{tpu_custom_call.1} parent=51 // pred_check_branch
          %777 = sbr.rel (%p775) target = $region60
        $region59: #{tpu_custom_call.1} parent=51 // pred_region
          %v778 = vld [vmem:[#allocation2] sm:$0xff]
          %v779 = vld [vmem:[%s7] sm:$0x1]
          %v781 = vlaneseq
          %v782 = vshrl.u32 %v781, 7
          %v783 = vsub.s32 0, %v782
          %v784 = vrot.slane %v779, %v783
          %v786 = vadd.f32 %v778, %v784
          %787 = vst.msk [vmem:[%s392] sm:$0xff] %vm450, %v786
        $region60: #{tpu_custom_call.1} parent=51 // pred_fallthru
          _
        %s788 = sand.u32 %s245, 1
        %s789 = scalar_lea.sflag [#allocation4], %s788
        %s790 = sand.u32 %s245, 1
        %s791 = smul.addr %s790, 8
        %s792 = scalar_lea.vmem [#allocation3], %s791
        // Predicated region
        $region61: #{tpu_custom_call.1} parent=51 // pred_check
          %p793 = pneg %p255
        $region62: #{tpu_custom_call.1} parent=51 // pred_check_branch
          %795 = sbr.rel (%p793) target = $region64
        $region63: #{tpu_custom_call.1} parent=51 // pred_region
          %s797 = ssub.s32 128, 128
          %798 = vsyncadd %s789, %s797
          %s799 = smul.addr %s26, 128
          %s800 = scalar_lea.hbm %s8, %s799
          %s802 = sshll.u32 %s792, 4
          %s803 = int_to_ptr.vmem [resolvable:$true] %s802
          %805 = dma.vmem_to_hbm [thread:$0]  %s803, 128, %s800, %s789
        $region64: #{tpu_custom_call.1} parent=51 // pred_fallthru
          _
      $region52: #{tpu_custom_call.1} parent=5 // pred_fallthru
        _
      %p806 = scmp.le.s32.totalorder 2, %s17
      // Predicated region
      $region65: #{tpu_custom_call.1} parent=5 // pred_check
        %p807 = pneg %p806
      $region66: #{tpu_custom_call.1} parent=5 // pred_check_branch
        %809 = sbr.rel (%p807) target = $region68
      $region67: #{tpu_custom_call.1} parent=5 // pred_region
        %s810 = ssub.s32 %s17, 2
        // Predicated region
        $region69: #{tpu_custom_call.1} parent=67 // pred_check
          %p811 = pneg %p261
        $region70: #{tpu_custom_call.1} parent=67 // pred_check_branch
          %813 = sbr.rel (%p811) target = $region72
        $region71: #{tpu_custom_call.1} parent=67 // pred_region
          %s814 = sand.u32 %s246, 1
          %s815 = scalar_lea.sflag [#allocation4], %s814
          %s816 = sand.u32 %s246, 1
          %s817 = smul.addr %s816, 8
          %s818 = scalar_lea.vmem [#allocation3], %s817
          %819 = dma.done %s815, 128
        $region72: #{tpu_custom_call.1} parent=67 // pred_fallthru
          _
      $region68: #{tpu_custom_call.1} parent=5 // pred_fallthru
        _
    $region6: #{tpu_custom_call.1} parent=1 // loop_footer
      %s21 = sadd.s32 1, %s17
    $region7: #{tpu_custom_call.1} parent=1 // loop_footer_branch
      %16 = sbr.rel target = $region3
    $region8: #{tpu_custom_call.1} parent=1 // loop_exit
      _
    %820 = vsyncpa [#allocation4], 1
    %s821 = scalar_lea.sflag [#allocation4], 1
    %822 = vsyncpa %s821, 1

</llo_original>
